<compile_context>
chip_gen: v7x
topology: tpu7x:2x2x1
jax: 0.10.0
libtpu: 0.0.40
codegen_flags: <defaults>
</compile_context>

<pallas_src>
import math

import jax
import jax.numpy as jnp
from jax.experimental import pallas as pl
from jax.experimental.pallas import tpu as pltpu


def _round_up(a, b):
    return (a + b - 1) // b * b


def _pad2(a, rows, cols, dtype=None):
    out = jnp.pad(a, ((0, rows - a.shape[0]), (0, cols - a.shape[1])))
    return out.astype(dtype) if dtype is not None else out


# ---------------------------------------------------------------------------
# Kernel 1: pool MLP  pooled = relu(x @ W_pool + b_pool), tiled over node rows.
# ---------------------------------------------------------------------------
def _pool_mlp_kernel(x_ref, w_ref, b_ref, out_ref):
    p = jnp.dot(x_ref[...], w_ref[...], preferred_element_type=jnp.float32) + b_ref[...]
    out_ref[...] = jnp.maximum(p, 0.0).astype(out_ref.dtype)


def _pool_mlp(x_bf16, w_pool_bf16, b_pool, *, row_tile=128):
    n_p, fin_p = x_bf16.shape
    assert n_p % row_tile == 0
    return pl.pallas_call(
        _pool_mlp_kernel,
        out_shape=jax.ShapeDtypeStruct((n_p, fin_p), jnp.bfloat16),
        grid_spec=pltpu.PrefetchScalarGridSpec(
            num_scalar_prefetch=0,
            grid=(n_p // row_tile,),
            in_specs=[
                pl.BlockSpec((row_tile, fin_p), lambda i: (i, 0)),
                pl.BlockSpec((fin_p, fin_p), lambda i: (0, 0)),
                pl.BlockSpec((1, fin_p), lambda i: (0, 0)),
            ],
            out_specs=pl.BlockSpec((row_tile, fin_p), lambda i: (i, 0)),
        ),
        compiler_params=pltpu.CompilerParams(dimension_semantics=("parallel",)),
    )(x_bf16, w_pool_bf16, b_pool)


# ---------------------------------------------------------------------------
# Kernel 2: max-aggregation over source chunks + self/neighbor projections.
# grid = (dst tiles, src chunks); running-max accumulator in VMEM scratch.
# ---------------------------------------------------------------------------
def _make_agg_kernel(apply_relu: bool, n_sub: int, sub: int):
    def kernel(x_dst_ref, adj_ref, pooled_ref, wself_ref, wneigh_ref, bias_ref,
               out_ref, acc_ref):
        k = pl.program_id(1)

        @pl.when(k == 0)
        def _():
            acc_ref[...] = jnp.zeros_like(acc_ref)

        # pooled >= 0 (post-ReLU) and adj is 0/1, so a multiplicative mask plus a max
        # against a zero-initialized accumulator is exactly DGL's 'pool' max aggregation
        # and yields 0 for zero-in-degree (and padded) destination nodes.
        adj = adj_ref[...].astype(jnp.float32)        # (TN, TS)  f32 VPU path (v5e-safe)
        pooled = pooled_ref[...].astype(jnp.float32)  # (TS, F)
        acc = acc_ref[...]
        for j in range(n_sub):                        # static sub-chunks: bounded temps
            a = adj[:, j * sub:(j + 1) * sub]                      # (TN, sub)
            p = pooled[j * sub:(j + 1) * sub, :]                   # (sub, F)
            acc = jnp.maximum(acc, jnp.max(a[:, :, None] * p[None, :, :], axis=1))
        acc_ref[...] = acc

        @pl.when(k == pl.num_programs(1) - 1)
        def _():
            h_neigh = acc_ref[...].astype(jnp.bfloat16)
            rst = (jnp.dot(x_dst_ref[...], wself_ref[...],
                           preferred_element_type=jnp.float32)
                   + jnp.dot(h_neigh, wneigh_ref[...],
                             preferred_element_type=jnp.float32)
                   + bias_ref[...])
            if apply_relu:
                rst = jnp.maximum(rst, 0.0)
            out_ref[...] = rst.astype(out_ref.dtype)

    return kernel


def sage_conv_pool(x_bf16, adj_bf16, params, *, apply_relu, out_dtype=jnp.bfloat16,
                   tile_dst=64, tile_src=128, src_sub=32):
    """One SAGEConv('pool') layer.

    x_bf16   : (Np, Fin_p) bf16, feature-padded node features (Np % tiles == 0)
    adj_bf16 : (Np, Np)    bf16, adj[dst, src] = 1 iff edge src->dst (padding = 0)
    params   : padded params from _pad_params (bf16 weights, f32 biases)
    """
    n_p, fin_p = x_bf16.shape
    fout_p = params["w_self"].shape[1]
    assert tile_dst % 16 == 0 and tile_src % 128 == 0        # bf16 tile alignment
    assert n_p % tile_dst == 0 and n_p % tile_src == 0
    assert tile_src % src_sub == 0 and src_sub % 8 == 0

    # Pool MLP hoisted out of the per-dst-tile loop: computed once per layer.
    pooled = _pool_mlp(x_bf16, params["w_pool"], params["b_pool"], row_tile=tile_src)

    grid = (n_p // tile_dst, n_p // tile_src)
    kernel = _make_agg_kernel(apply_relu, tile_src // src_sub, src_sub)
    return pl.pallas_call(
        kernel,
        out_shape=jax.ShapeDtypeStruct((n_p, fout_p), out_dtype),
        grid_spec=pltpu.PrefetchScalarGridSpec(
            num_scalar_prefetch=0,
            grid=grid,
            in_specs=[
                pl.BlockSpec((tile_dst, fin_p), lambda i, k: (i, 0)),      # x (dst rows)
                pl.BlockSpec((tile_dst, tile_src), lambda i, k: (i, k)),   # adj chunk
                pl.BlockSpec((tile_src, fin_p), lambda i, k: (k, 0)),      # pooled chunk
                pl.BlockSpec((fin_p, fout_p), lambda i, k: (0, 0)),        # W_self
                pl.BlockSpec((fin_p, fout_p), lambda i, k: (0, 0)),        # W_neigh
                pl.BlockSpec((1, fout_p), lambda i, k: (0, 0)),            # bias
            ],
            out_specs=pl.BlockSpec((tile_dst, fout_p), lambda i, k: (i, 0)),
            scratch_shapes=[pltpu.VMEM((tile_dst, fin_p), jnp.float32)],
        ),
        compiler_params=pltpu.CompilerParams(
            dimension_semantics=("parallel", "arbitrary")),
    )(x_bf16, adj_bf16, pooled, params["w_self"], params["w_neigh"], params["bias"])


# ---------------------------------------------------------------------------
# Parameters (DGL SAGEConv shapes, weights stored (in, out) for row-vector matmul).
# ---------------------------------------------------------------------------
def _init_layer_params(key, fin, fout):
    k1, k2, k3, k4 = jax.random.split(key, 4)

    def xav(k, fan_in, fan_out):
        bound = math.sqrt(6.0 / (fan_in + fan_out))
        return jax.random.uniform(k, (fan_in, fan_out), jnp.float32, -bound, bound)

    return {
        "w_pool": xav(k1, fin, fin),                                     # fc_pool.weight^T
        "b_pool": jax.random.uniform(k2, (1, fin), jnp.float32,
                                     -1.0 / math.sqrt(fin), 1.0 / math.sqrt(fin)),
        "w_self": xav(k3, fin, fout),                                    # fc_self.weight^T
        "w_neigh": xav(k4, fin, fout),                                   # fc_neigh.weight^T
        "bias": jnp.zeros((1, fout), jnp.float32),                       # SAGEConv bias
    }


def _pad_params(p, fin_p, fout_p):
    return {
        "w_pool": _pad2(p["w_pool"], fin_p, fin_p, jnp.bfloat16),
        "b_pool": _pad2(p["b_pool"], 1, fin_p),
        "w_self": _pad2(p["w_self"], fin_p, fout_p, jnp.bfloat16),
        "w_neigh": _pad2(p["w_neigh"], fin_p, fout_p, jnp.bfloat16),
        "bias": _pad2(p["bias"], 1, fout_p),
    }


# ---------------------------------------------------------------------------
# Full forward pass (pads once, runs 3 layers on padded shapes, slices at the end).
# ---------------------------------------------------------------------------
def sage_forward(x, adj, p1, p2, p3, *, tile_dst=64, tile_src=128):
    n, in_feats = x.shape
    hid = p1["w_self"].shape[1]
    out_feats = p3["w_self"].shape[1]
    lane = 128

    n_p = _round_up(n, math.lcm(tile_dst, tile_src))
    in_p = _round_up(in_feats, lane)
    hid_p = _round_up(hid, lane)
    out_p = _round_up(out_feats, lane)

    x_p = _pad2(x, n_p, in_p, jnp.bfloat16)
    adj_p = _pad2(adj, n_p, n_p, jnp.bfloat16)   # 0/1 exactly representable in bf16

    q1 = _pad_params(p1, in_p, hid_p)
    q2 = _pad_params(p2, hid_p, hid_p)
    q3 = _pad_params(p3, hid_p, out_p)

    kw = dict(tile_dst=tile_dst, tile_src=tile_src)
    h = sage_conv_pool(x_p, adj_p, q1, apply_relu=True, out_dtype=jnp.bfloat16, **kw)
    h = sage_conv_pool(h, adj_p, q2, apply_relu=True, out_dtype=jnp.bfloat16, **kw)
    h = sage_conv_pool(h, adj_p, q3, apply_relu=False, out_dtype=jnp.float32, **kw)
    return h[:n, :out_feats]


# ---------------------------------------------------------------------------
# Pure-JAX reference with mirrored bf16 numerics for the correctness check.
# ---------------------------------------------------------------------------
def _ref_layer(x_bf16, adj_f32, q, apply_relu, out_dtype):
    pooled = jnp.maximum(
        jnp.dot(x_bf16, q["w_pool"], preferred_element_type=jnp.float32) + q["b_pool"],
        0.0).astype(jnp.bfloat16)
    h_neigh = jnp.max(adj_f32[:, :, None] * pooled.astype(jnp.float32)[None, :, :], axis=1)
    rst = (jnp.dot(x_bf16, q["w_self"], preferred_element_type=jnp.float32)
           + jnp.dot(h_neigh.astype(jnp.bfloat16), q["w_neigh"],
                     preferred_element_type=jnp.float32)
           + q["bias"])
    if apply_relu:
        rst = jnp.maximum(rst, 0.0)
    return rst.astype(out_dtype)


def _reference_forward(x, adj, p1, p2, p3, *, tile_dst=64, tile_src=128):
    n, in_feats = x.shape
    hid = p1["w_self"].shape[1]
    out_feats = p3["w_self"].shape[1]
    lane = 128
    n_p = _round_up(n, math.lcm(tile_dst, tile_src))
    in_p, hid_p, out_p = (_round_up(f, lane) for f in (in_feats, hid, out_feats))
    x_p = _pad2(x, n_p, in_p, jnp.bfloat16)
    adj_f32 = _pad2(adj, n_p, n_p)
    q1 = _pad_params(p1, in_p, hid_p)
    q2 = _pad_params(p2, hid_p, hid_p)
    q3 = _pad_params(p3, hid_p, out_p)
    h = _ref_layer(x_p, adj_f32, q1, True, jnp.bfloat16)
    h = _ref_layer(h, adj_f32, q2, True, jnp.bfloat16)
    h = _ref_layer(h, adj_f32, q3, False, jnp.float32)
    return h[:n, :out_feats]


if __name__ == "__main__":
    key = jax.random.PRNGKey(0)
    k_x, k_adj, k_p1, k_p2, k_p3 = jax.random.split(key, 5)

    # Small synthetic graph (non-aligned sizes to exercise the padding paths).
    num_nodes = 200
    in_feats, hid_feats, out_feats = 24, 32, 16

    x = jax.random.normal(k_x, (num_nodes, in_feats), jnp.float32)
    adj = jax.random.bernoulli(k_adj, 0.05, (num_nodes, num_nodes)).astype(jnp.float32)
    adj = jnp.maximum(adj, jnp.eye(num_nodes, dtype=jnp.float32))  # self-loops

    p1 = _init_layer_params(k_p1, in_feats, hid_feats)
    p2 = _init_layer_params(k_p2, hid_feats, hid_feats)
    p3 = _init_layer_params(k_p3, hid_feats, out_feats)

    out = jax.block_until_ready(sage_forward(x, adj, p1, p2, p3))
    assert out.shape == (num_nodes, out_feats)
    assert bool(jnp.all(jnp.isfinite(out)))

    ref = _reference_forward(x, adj, p1, p2, p3)
    err = float(jnp.max(jnp.abs(out - ref)))
    assert err < 5e-2, f"max abs error vs reference: {err}"

    print("KERNEL_OK")
</pallas_src>

<mosaic_0001>
module attributes {stable_mosaic.version = 11 : i64} {
  func.func @_pool_mlp_kernel(%arg0: i32, %arg1: memref<128x128xbf16, #tpu.memory_space<vmem>>, %arg2: memref<128x128xbf16, #tpu.memory_space<vmem>>, %arg3: memref<1x128xf32, #tpu.memory_space<vmem>>, %arg4: memref<128x128xbf16, #tpu.memory_space<vmem>>) attributes {dimension_semantics = [#tpu.dimension_semantics<parallel>], iteration_bounds = array<i64: 2>, scalar_prefetch = 0 : i64, scratch_operands = 0 : i64, tpu.core_type = #tpu.core_type<tc>, window_params = [{transform_indices = @transform_0, window_bounds = array<i64: 128, 128>}, {pipeline_mode = #tpu.pipeline_mode<synchronous>, transform_indices = @transform_1, window_bounds = array<i64: 128, 128>}, {pipeline_mode = #tpu.pipeline_mode<synchronous>, transform_indices = @transform_2, window_bounds = array<i64: 1, 128>}, {transform_indices = @transform_3, window_bounds = array<i64: 128, 128>}]} {
    %c0 = arith.constant 0 : index
    %c0_0 = arith.constant 0 : index
    %0 = vector.load %arg1[%c0, %c0_0] : memref<128x128xbf16, #tpu.memory_space<vmem>>, vector<128x128xbf16>
    %c0_1 = arith.constant 0 : index
    %c0_2 = arith.constant 0 : index
    %1 = vector.load %arg2[%c0_1, %c0_2] : memref<128x128xbf16, #tpu.memory_space<vmem>>, vector<128x128xbf16>
    %cst = arith.constant dense<0.000000e+00> : vector<128x128xf32>
    %2 = tpu.matmul %0, %1, %cst {dimension_numbers = #tpu.dot_dimension_numbers<[1], [0], [0], [1], [0, 0, 1, 1], [], []>} : vector<128x128xbf16>, vector<128x128xbf16>, vector<128x128xf32> -> vector<128x128xf32>
    %c0_3 = arith.constant 0 : index
    %c0_4 = arith.constant 0 : index
    %3 = vector.load %arg3[%c0_3, %c0_4] : memref<1x128xf32, #tpu.memory_space<vmem>>, vector<1x128xf32>
    %4 = vector.broadcast %3 : vector<1x128xf32> to vector<128x128xf32>
    %5 = arith.addf %2, %4 : vector<128x128xf32>
    %cst_5 = arith.constant 0.000000e+00 : f32
    %6 = vector.broadcast %cst_5 : f32 to vector<128x128xf32>
    %7 = arith.maximumf %5, %6 : vector<128x128xf32>
    %8 = arith.truncf %7 : vector<128x128xf32> to vector<128x128xbf16>
    %c0_6 = arith.constant 0 : index
    %c0_7 = arith.constant 0 : index
    %9 = vector.load %arg4[%c0_6, %c0_7] : memref<128x128xbf16, #tpu.memory_space<vmem>>, vector<128x128xbf16>
    tpu.vector_store %arg4[%c0_6, %c0_7], %8 {strides = array<i32>} : memref<128x128xbf16, #tpu.memory_space<vmem>>, vector<128x128xbf16>,
    return
  }
  func.func @transform_0(%arg0: i32) -> (i32, i32) {
    %c0_i32 = arith.constant 0 : i32
    %c0_i32_0 = arith.constant 0 : i32
    return %arg0, %c0_i32 : i32, i32
  }
  func.func @transform_1(%arg0: i32) -> (i32, i32) {
    %c0_i32 = arith.constant 0 : i32
    %c0_i32_0 = arith.constant 0 : i32
    %c0_i32_1 = arith.constant 0 : i32
    return %c0_i32, %c0_i32_0 : i32, i32
  }
  func.func @transform_2(%arg0: i32) -> (i32, i32) {
    %c0_i32 = arith.constant 0 : i32
    %c0_i32_0 = arith.constant 0 : i32
    %c0_i32_1 = arith.constant 0 : i32
    return %c0_i32, %c0_i32_0 : i32, i32
  }
  func.func @transform_3(%arg0: i32) -> (i32, i32) {
    %c0_i32 = arith.constant 0 : i32
    %c0_i32_0 = arith.constant 0 : i32
    return %arg0, %c0_i32 : i32, i32
  }
}

</mosaic_0001>

<llo_original>
// kernel: tpu_custom_call.1
$region0: #{tpu_custom_call.1}
  #allocation0 [shape = 'u32[]', space=smem, size = 0x4, offset = 0x4, fixed_abs, tag = 'smem constant byte address 0x4 - core index']
  #allocation1 [shape = 'u32[144,128]{1,0:T(1,128)}', space=vmem, size = 0x12000, scoped, tag = 'internal scratch']
  %s0 = inlined_call_operand.hbm [shape: bf16[256,128], index: 0, kind: input, shape index: {}]
  %s1 = inlined_call_operand.hbm [shape: bf16[128,128], index: 1, kind: input, shape index: {}]
  %s2 = inlined_call_operand.vmem [shape: f32[1,128], index: 2, kind: input, shape index: {}]
  %s3 = inlined_call_operand.hbm [shape: bf16[256,128], index: 3, kind: output, shape index: {}]
  %s4 = sld [smem:[#allocation0]]
  $region53: #{tpu_custom_call.1} parent=0
    _
  %s6 = ssub.s32 1, %s4
  %s7 = scalar_select 0, %s6, %s4
  $region1: #{tpu_custom_call.1} parent=0
    #allocation2 [shape = 'u8[65536]{0}', space=vmem, size = 0x10000, scoped, tag = 'input window, operand 0']
    #allocation3 [shape = 's32[2]{0}', space=sflag, size = 0x8, scoped, tag = 'scoped memory for tpu_custom_call.1']
    #allocation4 [shape = 's32[2]{0}', space=sflag, size = 0x8, scoped, tag = 'scoped memory for tpu_custom_call.1']
    #allocation5 [shape = 'u8[32768]{0}', space=vmem, size = 0x8000, scoped, tag = 'input window, operand 1, single buffered']
    #allocation6 [shape = 's32[1]{0}', space=sflag, size = 0x4, scoped, tag = 'scoped memory for tpu_custom_call.1']
    #allocation7 [shape = 'u8[65536]{0}', space=vmem, size = 0x10000, scoped, tag = 'output window, operand 0']
    %8 = vsyncpa [#allocation3], 0
    %s9 = scalar_lea.sflag [#allocation3], 1
    %10 = vsyncpa %s9, 0
    %11 = vsyncpa [#allocation6], 0
    %12 = vsyncpa [#allocation4], 0
    %s13 = scalar_lea.sflag [#allocation4], 1
    %14 = vsyncpa %s13, 0
    loop: start=0, step=1, limit=4
    $region2: #{tpu_custom_call.1} parent=1 // loop_pre_header
      _
    $region3: #{tpu_custom_call.1} parent=1 // loop_header
      %s16 = sphi 0, %s20
      %p17 = scmp.ge.s32.totalorder %s16, 4
      %s26 = sphi 0, %s28
      %s29 = sphi 0, %s26
      %s30 = sphi 0, %s29
      %s46 = sphi 0, %s30
      %s50 = sphi 0, %s50
      %s52 = sphi 0, %s50
      %s53 = sphi 0, %s52
      %s67 = sphi 0, %s53
      %s71 = sphi 0, %s71
      %s73 = sphi 0, %s71
      %s74 = sphi 0, %s73
      %s88 = sphi 0, %s74
      %s94 = sphi 0, %s96
      %s97 = sphi 0, %s94
      %s98 = sphi 0, %s97
      %s114 = sphi 0, %s98
    $region4: #{tpu_custom_call.1} parent=1 // loop_header_branch
      %19 = sbr.rel (%p17) target = $region8
    $region5: #{tpu_custom_call.1} parent=1 // loop_body
      %s21 = ssub.s32 %s16, 1
      %s22 = ssub.s32 %s16, 2
      %s23 = sadd.s32 %s16, 1
      %s24 = ssub.s32 %s16, %s23
      %p25 = scmp.eq.s32.totalorder %s24, 0
      %s27 = sadd.s32 %s26, 1
      %s28 = scalar_select %p25, %s26, %s27
      %p31 = pneg %p25
      %p32 = scmp.eq.s32.totalorder %s16, 1
      %p33 = por %p31, %p32
      %p34 = scmp.ne.s32.totalorder %s26, %s29
      %p35 = scmp.eq.s32.totalorder %s16, 0
      %p36 = por %p34, %p35
      %p37 = scmp.ne.s32.totalorder %s26, %s29
      %p38 = scmp.eq.s32.totalorder %s21, 1
      %p39 = por %p37, %p38
      %p40 = scmp.ne.s32.totalorder %s29, %s30
      %p41 = scmp.eq.s32.totalorder %s21, 0
      %p42 = por %p40, %p41
      %p43 = scmp.ne.s32.totalorder %s29, %s30
      %p44 = scmp.eq.s32.totalorder %s22, 1
      %p45 = por %p43, %p44
      %p47 = scmp.ne.s32.totalorder %s30, %s46
      %p48 = scmp.eq.s32.totalorder %s22, 0
      %p49 = por %p47, %p48
      %s51 = sadd.s32 %s50, 1
      %p54 = scmp.eq.s32.totalorder %s16, 1
      %p55 = scmp.ne.s32.totalorder %s50, %s52
      %p56 = scmp.eq.s32.totalorder %s16, 0
      %p57 = por %p55, %p56
      %p58 = scmp.ne.s32.totalorder %s50, %s52
      %p59 = scmp.eq.s32.totalorder %s21, 1
      %p60 = por %p58, %p59
      %p61 = scmp.ne.s32.totalorder %s52, %s53
      %p62 = scmp.eq.s32.totalorder %s21, 0
      %p63 = por %p61, %p62
      %p64 = scmp.ne.s32.totalorder %s52, %s53
      %p65 = scmp.eq.s32.totalorder %s22, 1
      %p66 = por %p64, %p65
      %p68 = scmp.ne.s32.totalorder %s53, %s67
      %p69 = scmp.eq.s32.totalorder %s22, 0
      %p70 = por %p68, %p69
      %s72 = sadd.s32 %s71, 1
      %p75 = scmp.eq.s32.totalorder %s16, 1
      %p76 = scmp.ne.s32.totalorder %s71, %s73
      %p77 = scmp.eq.s32.totalorder %s16, 0
      %p78 = por %p76, %p77
      %p79 = scmp.ne.s32.totalorder %s71, %s73
      %p80 = scmp.eq.s32.totalorder %s21, 1
      %p81 = por %p79, %p80
      %p82 = scmp.ne.s32.totalorder %s73, %s74
      %p83 = scmp.eq.s32.totalorder %s21, 0
      %p84 = por %p82, %p83
      %p85 = scmp.ne.s32.totalorder %s73, %s74
      %p86 = scmp.eq.s32.totalorder %s22, 1
      %p87 = por %p85, %p86
      %p89 = scmp.ne.s32.totalorder %s74, %s88
      %p90 = scmp.eq.s32.totalorder %s22, 0
      %p91 = por %p89, %p90
      %s92 = ssub.s32 %s16, %s23
      %p93 = scmp.eq.s32.totalorder %s92, 0
      %s95 = sadd.s32 %s94, 1
      %s96 = scalar_select %p93, %s94, %s95
      %p99 = pneg %p93
      %p100 = scmp.eq.s32.totalorder %s16, 1
      %p101 = por %p99, %p100
      %p102 = scmp.ne.s32.totalorder %s94, %s97
      %p103 = scmp.eq.s32.totalorder %s16, 0
      %p104 = por %p102, %p103
      %p105 = scmp.ne.s32.totalorder %s94, %s97
      %p106 = scmp.eq.s32.totalorder %s21, 1
      %p107 = por %p105, %p106
      %p108 = scmp.ne.s32.totalorder %s97, %s98
      %p109 = scmp.eq.s32.totalorder %s21, 0
      %p110 = por %p108, %p109
      %p111 = scmp.ne.s32.totalorder %s97, %s98
      %p112 = scmp.eq.s32.totalorder %s22, 1
      %p113 = por %p111, %p112
      %p115 = scmp.ne.s32.totalorder %s98, %s114
      %p116 = scmp.eq.s32.totalorder %s22, 0
      %p117 = por %p115, %p116
      %p118 = scmp.le.s32.totalorder 1, %s16
      %p119 = scmp.lt.s32.totalorder %s16, 3
      %p120 = pnand %p118, %p119
      %p121 = pneg %p120
      // Predicated region
      $region9: #{tpu_custom_call.1} parent=5 // pred_check
        _
      $region10: #{tpu_custom_call.1} parent=5 // pred_check_branch
        %123 = sbr.rel (%p120) target = $region12
      $region11: #{tpu_custom_call.1} parent=5 // pred_region
        %s124 = ssub.s32 %s16, 1
        // Predicated region
        $region13: #{tpu_custom_call.1} parent=11 // pred_check
          %p125 = pneg %p63
        $region14: #{tpu_custom_call.1} parent=11 // pred_check_branch
          %127 = sbr.rel (%p125) target = $region16
        $region15: #{tpu_custom_call.1} parent=11 // pred_region
          %s129 = ssub.s32 1024, 1024
          %130 = vsyncadd [#allocation6], %s129
          %s131 = sshll.u32 [#allocation5], 4
          %s132 = int_to_ptr.vmem [resolvable:$true] %s131
          %137 = dma.hbm_to_vmem [thread:$0]  %s1, 1024, %s132, [#allocation6], 64, 64, 4
        $region16: #{tpu_custom_call.1} parent=11 // pred_fallthru
          _
        // Predicated region
        $region17: #{tpu_custom_call.1} parent=11 // pred_check
          %p138 = pneg %p84
        $region18: #{tpu_custom_call.1} parent=11 // pred_check_branch
          %140 = sbr.rel (%p138) target = $region20
        $region19: #{tpu_custom_call.1} parent=11 // pred_region
          _
        $region20: #{tpu_custom_call.1} parent=11 // pred_fallthru
          _
      $region12: #{tpu_custom_call.1} parent=5 // pred_fallthru
        _
      %p141 = scmp.lt.s32.totalorder %s16, 2
      // Predicated region
      $region21: #{tpu_custom_call.1} parent=5 // pred_check
        %p142 = pneg %p141
      $region22: #{tpu_custom_call.1} parent=5 // pred_check_branch
        %144 = sbr.rel (%p142) target = $region24
      $region23: #{tpu_custom_call.1} parent=5 // pred_region
        // Predicated region
        $region25: #{tpu_custom_call.1} parent=23 // pred_check
          %p145 = pneg %p36
        $region26: #{tpu_custom_call.1} parent=23 // pred_check_branch
          %147 = sbr.rel (%p145) target = $region28
        $region27: #{tpu_custom_call.1} parent=23 // pred_region
          %s148 = sand.u32 %s26, 1
          %s149 = scalar_lea.sflag [#allocation3], %s148
          %s150 = sand.u32 %s26, 1
          %s151 = smul.addr %s150, 64
          %s152 = scalar_lea.vmem [#allocation2], %s151
          %s153 = smul.u32 16, %s16
          %s155 = ssub.s32 1024, 1024
          %156 = vsyncadd %s149, %s155
          %s157 = smul.addr %s153, 64
          %s158 = scalar_lea.hbm %s0, %s157
          %s159 = sshll.u32 %s152, 4
          %s160 = int_to_ptr.vmem [resolvable:$true] %s159
          %165 = dma.hbm_to_vmem [thread:$0]  %s158, 1024, %s160, %s149, 64, 64, 4
        $region28: #{tpu_custom_call.1} parent=23 // pred_fallthru
          _
      $region24: #{tpu_custom_call.1} parent=5 // pred_fallthru
        _
      %p166 = scmp.le.s32.totalorder 1, %s16
      %p167 = scmp.lt.s32.totalorder %s16, 3
      %p168 = pnand %p166, %p167
      %p169 = pneg %p168
      // Predicated region
      $region29: #{tpu_custom_call.1} parent=5 // pred_check
        _
      $region30: #{tpu_custom_call.1} parent=5 // pred_check_branch
        %171 = sbr.rel (%p168) target = $region32
      $region31: #{tpu_custom_call.1} parent=5 // pred_region
        %s172 = ssub.s32 %s16, 1
        %s173 = sand.u32 %s29, 1
        %s174 = scalar_lea.sflag [#allocation3], %s173
        %s175 = sand.u32 %s29, 1
        %s176 = smul.addr %s175, 64
        %s177 = scalar_lea.vmem [#allocation2], %s176
        // Predicated region
        $region33: #{tpu_custom_call.1} parent=31 // pred_check
          %p178 = pneg %p42
        $region34: #{tpu_custom_call.1} parent=31 // pred_check_branch
          %180 = sbr.rel (%p178) target = $region36
        $region35: #{tpu_custom_call.1} parent=31 // pred_region
          %181 = dma.done %s174, 1024
        $region36: #{tpu_custom_call.1} parent=31 // pred_fallthru
          _
        // Predicated region
        $region37: #{tpu_custom_call.1} parent=31 // pred_check
          %p182 = pneg %p63
        $region38: #{tpu_custom_call.1} parent=31 // pred_check_branch
          %184 = sbr.rel (%p182) target = $region40
        $region39: #{tpu_custom_call.1} parent=31 // pred_region
          %185 = dma.done [#allocation6], 1024
        $region40: #{tpu_custom_call.1} parent=31 // pred_fallthru
          _
        %s186 = sand.u32 %s29, 1
        %s187 = scalar_lea.sflag [#allocation3], %s186
        %s188 = sand.u32 %s29, 1
        %s189 = smul.addr %s188, 64
        %s190 = scalar_lea.vmem [#allocation2], %s189
        %p191 = pneg %p42
        %p192 = pneg %p39
        %p193 = pneg %p63
        %p194 = pneg %p60
        %p195 = pneg %p84
        %p196 = pneg %p81
        %p197 = pneg %p110
        %p198 = pneg %p107
        %s199 = sand.u32 %s97, 1
        %s200 = scalar_lea.sflag [#allocation4], %s199
        %s201 = sand.u32 %s97, 1
        %s202 = smul.addr %s201, 64
        %s203 = scalar_lea.vmem [#allocation7], %s202
        %s204 = smul.u32 16, %s21
        %s205 = smul.u32 16, %s21
        %v207 = vld [vmem:[%s177] sm:$0xf]
        %v208 = vld [vmem:[%s177 + $0x4] sm:$0xf]
        %v209 = vld [vmem:[%s177 + $0x8] sm:$0xf]
        %v210 = vld [vmem:[%s177 + $0xc] sm:$0xf]
        %v211 = vld [vmem:[%s177 + $0x10] sm:$0xf]
        %v212 = vld [vmem:[%s177 + $0x14] sm:$0xf]
        %v213 = vld [vmem:[%s177 + $0x18] sm:$0xf]
        %v214 = vld [vmem:[%s177 + $0x1c] sm:$0xf]
        %v215 = vld [vmem:[%s177 + $0x20] sm:$0xf]
        %v216 = vld [vmem:[%s177 + $0x24] sm:$0xf]
        %v217 = vld [vmem:[%s177 + $0x28] sm:$0xf]
        %v218 = vld [vmem:[%s177 + $0x2c] sm:$0xf]
        %v219 = vld [vmem:[%s177 + $0x30] sm:$0xf]
        %v220 = vld [vmem:[%s177 + $0x34] sm:$0xf]
        %v221 = vld [vmem:[%s177 + $0x38] sm:$0xf]
        %v222 = vld [vmem:[%s177 + $0x3c] sm:$0xf]
        %v223 = vld [vmem:[#allocation5] sm:$0xf]
        %v224 = vld [vmem:[#allocation5 + $0x4] sm:$0xf]
        %v225 = vld [vmem:[#allocation5 + $0x8] sm:$0xf]
        %v226 = vld [vmem:[#allocation5 + $0xc] sm:$0xf]
        %v227 = vld [vmem:[#allocation5 + $0x10] sm:$0xf]
        %v228 = vld [vmem:[#allocation5 + $0x14] sm:$0xf]
        %v229 = vld [vmem:[#allocation5 + $0x18] sm:$0xf]
        %v230 = vld [vmem:[#allocation5 + $0x1c] sm:$0xf]
        %v231 = vld [vmem:[#allocation5 + $0x20] sm:$0xf]
        %v232 = vld [vmem:[#allocation5 + $0x24] sm:$0xf]
        %v233 = vld [vmem:[#allocation5 + $0x28] sm:$0xf]
        %v234 = vld [vmem:[#allocation5 + $0x2c] sm:$0xf]
        %v235 = vld [vmem:[#allocation5 + $0x30] sm:$0xf]
        %v236 = vld [vmem:[#allocation5 + $0x34] sm:$0xf]
        %v237 = vld [vmem:[#allocation5 + $0x38] sm:$0xf]
        %v238 = vld [vmem:[#allocation5 + $0x3c] sm:$0xf]
        %v239 = vld [vmem:[%s2] sm:$0x1]
        %v241 = vlaneseq
        %v242 = vshrl.u32 %v241, 7
        %v243 = vsub.s32 0, %v242
        %v244 = vrot.slane %v239, %v243
        %v262 = vunpack.c.l.b16 %v207
        %v263 = vunpack.c.l.b16 %v208
        %v264 = vunpack.c.l.b16 %v209
        %v265 = vunpack.c.l.b16 %v210
        %v266 = vunpack.c.l.b16 %v211
        %v267 = vunpack.c.l.b16 %v212
        %v268 = vunpack.c.l.b16 %v213
        %v269 = vunpack.c.l.b16 %v214
        %v270 = vunpack.c.l.b16 %v215
        %v271 = vunpack.c.l.b16 %v216
        %v272 = vunpack.c.l.b16 %v217
        %v273 = vunpack.c.l.b16 %v218
        %v274 = vunpack.c.l.b16 %v219
        %v275 = vunpack.c.l.b16 %v220
        %v276 = vunpack.c.l.b16 %v221
        %v277 = vunpack.c.l.b16 %v222
        %v278 = vpack.c.b16 %v263, %v262
        %v279 = vpack.c.b16 %v265, %v264
        %v280 = vpack.c.b16 %v267, %v266
        %v281 = vpack.c.b16 %v269, %v268
        %v282 = vpack.c.b16 %v271, %v270
        %v283 = vpack.c.b16 %v273, %v272
        %v284 = vpack.c.b16 %v275, %v274
        %v285 = vpack.c.b16 %v277, %v276
        %v310 = vunpack.c.l.b16 %v223
        %v311 = vunpack.c.l.b16 %v224
        %v312 = vunpack.c.l.b16 %v225
        %v313 = vunpack.c.l.b16 %v226
        %v314 = vunpack.c.l.b16 %v227
        %v315 = vunpack.c.l.b16 %v228
        %v316 = vunpack.c.l.b16 %v229
        %v317 = vunpack.c.l.b16 %v230
        %v318 = vunpack.c.l.b16 %v231
        %v319 = vunpack.c.l.b16 %v232
        %v320 = vunpack.c.l.b16 %v233
        %v321 = vunpack.c.l.b16 %v234
        %v322 = vunpack.c.l.b16 %v235
        %v323 = vunpack.c.l.b16 %v236
        %v324 = vunpack.c.l.b16 %v237
        %v325 = vunpack.c.l.b16 %v238
        %v326 = vpack.c.b16 %v311, %v310
        %v327 = vpack.c.b16 %v313, %v312
        %v328 = vpack.c.b16 %v315, %v314
        %v329 = vpack.c.b16 %v317, %v316
        %v330 = vpack.c.b16 %v319, %v318
        %v331 = vpack.c.b16 %v321, %v320
        %v332 = vpack.c.b16 %v323, %v322
        %v333 = vpack.c.b16 %v325, %v324
        %342 = vmatprep.subr.bf16.mxu0 0
        %343 = vmatpush1.bf16.msra.mxu0 %v326
        %344 = vmatprep.subr.bf16.mxu0 0
        %345 = vmatpush1.bf16.msra.mxu0 %v327
        %346 = vmatprep.subr.bf16.mxu0 0
        %347 = vmatpush1.bf16.msra.mxu0 %v328
        %348 = vmatprep.subr.bf16.mxu0 0
        %349 = vmatpush1.bf16.msra.mxu0 %v329
        %350 = vmatprep.subr.bf16.mxu0 0
        %351 = vmatpush1.bf16.msra.mxu0 %v330
        %352 = vmatprep.subr.bf16.mxu0 0
        %353 = vmatpush1.bf16.msra.mxu0 %v331
        %354 = vmatprep.subr.bf16.mxu0 0
        %355 = vmatpush1.bf16.msra.mxu0 %v332
        %356 = vmatprep.subr.bf16.mxu0 0
        %357 = vmatpush1.bf16.msra.mxu0 %v333
        %358 = vmatprep.subr.bf16.mxu0 0
        %359 = vmatpush1.bf16.msra.mxu0 0
        %360 = vmatprep.subr.bf16.mxu0 0
        %361 = vmatpush1.bf16.msra.mxu0 0
        %362 = vmatprep.subr.bf16.mxu0 0
        %363 = vmatpush1.bf16.msra.mxu0 0
        %364 = vmatprep.subr.bf16.mxu0 0
        %365 = vmatpush1.bf16.msra.mxu0 0
        %366 = vmatprep.subr.bf16.mxu0 0
        %367 = vmatpush1.bf16.msra.mxu0 0
        %368 = vmatprep.subr.bf16.mxu0 0
        %369 = vmatpush1.bf16.msra.mxu0 0
        %370 = vmatprep.subr.bf16.mxu0 0
        %371 = vmatpush1.bf16.msra.mxu0 0
        %372 = vmatprep.subr.bf16.mxu0 0
        %373 = vmatpush1.bf16.msra.mxu0 0
        %374 = vmatprep.mubr.bf16.mxu0 0
        %375 = vmatmul.mubr.bf16.gmra.mrb[0].mxu0 %v278
        %v376 = vpop.f32.mrb[0].mxu0
        %v377 = vadd.f32 %v244, %v376
        %v378 = vpop.f32.mrb[0].mxu0
        %v379 = vpop.f32.mrb[0].mxu0
        %v380 = vadd.f32 %v244, %v379
        %v381 = vpop.f32.mrb[0].mxu0
        %382 = vmatprep.mubr.bf16.mxu0 0
        %383 = vmatmul.mubr.bf16.gmra.mrb[0].mxu0 %v279
        %v384 = vpop.f32.mrb[0].mxu0
        %v385 = vadd.f32 %v244, %v384
        %v386 = vpop.f32.mrb[0].mxu0
        %v387 = vpop.f32.mrb[0].mxu0
        %v388 = vadd.f32 %v244, %v387
        %v389 = vpop.f32.mrb[0].mxu0
        %390 = vmatprep.mubr.bf16.mxu0 0
        %391 = vmatmul.mubr.bf16.gmra.mrb[0].mxu0 %v280
        %v392 = vpop.f32.mrb[0].mxu0
        %v393 = vadd.f32 %v244, %v392
        %v394 = vpop.f32.mrb[0].mxu0
        %v395 = vpop.f32.mrb[0].mxu0
        %v396 = vadd.f32 %v244, %v395
        %v397 = vpop.f32.mrb[0].mxu0
        %398 = vmatprep.mubr.bf16.mxu0 0
        %399 = vmatmul.mubr.bf16.gmra.mrb[0].mxu0 %v281
        %v400 = vpop.f32.mrb[0].mxu0
        %v401 = vadd.f32 %v244, %v400
        %v402 = vpop.f32.mrb[0].mxu0
        %v403 = vpop.f32.mrb[0].mxu0
        %v404 = vadd.f32 %v244, %v403
        %v405 = vpop.f32.mrb[0].mxu0
        %406 = vmatprep.mubr.bf16.mxu0 0
        %407 = vmatmul.mubr.bf16.gmra.mrb[0].mxu0 %v282
        %v408 = vpop.f32.mrb[0].mxu0
        %v409 = vadd.f32 %v244, %v408
        %v410 = vpop.f32.mrb[0].mxu0
        %v411 = vpop.f32.mrb[0].mxu0
        %v412 = vadd.f32 %v244, %v411
        %v413 = vpop.f32.mrb[0].mxu0
        %414 = vmatprep.mubr.bf16.mxu0 0
        %415 = vmatmul.mubr.bf16.gmra.mrb[0].mxu0 %v283
        %v416 = vpop.f32.mrb[0].mxu0
        %v417 = vadd.f32 %v244, %v416
        %v418 = vpop.f32.mrb[0].mxu0
        %v419 = vpop.f32.mrb[0].mxu0
        %v420 = vadd.f32 %v244, %v419
        %v421 = vpop.f32.mrb[0].mxu0
        %422 = vmatprep.mubr.bf16.mxu0 0
        %423 = vmatmul.mubr.bf16.gmra.mrb[0].mxu0 %v284
        %v424 = vpop.f32.mrb[0].mxu0
        %v425 = vadd.f32 %v244, %v424
        %v426 = vpop.f32.mrb[0].mxu0
        %v427 = vpop.f32.mrb[0].mxu0
        %v428 = vadd.f32 %v244, %v427
        %v429 = vpop.f32.mrb[0].mxu0
        %430 = vmatprep.mubr.bf16.mxu0 0
        %431 = vmatmul.mubr.bf16.gmra.mrb[0].mxu0 %v285
        %v432 = vpop.f32.mrb[0].mxu0
        %v433 = vadd.f32 %v244, %v432
        %v434 = vpop.f32.mrb[0].mxu0
        %v435 = vpop.f32.mrb[0].mxu0
        %v436 = vadd.f32 %v244, %v435
        %v437 = vpop.f32.mrb[0].mxu0
        %438 = vdwg.mxu0
        %v439 = vmax.f32 %v377, 0.0
        %v440 = vmax.f32 %v380, 0.0
        %v441 = vmax.f32 %v385, 0.0
        %v442 = vmax.f32 %v388, 0.0
        %v443 = vmax.f32 %v393, 0.0
        %v444 = vmax.f32 %v396, 0.0
        %v445 = vmax.f32 %v401, 0.0
        %v446 = vmax.f32 %v404, 0.0
        %v447 = vmax.f32 %v409, 0.0
        %v448 = vmax.f32 %v412, 0.0
        %v449 = vmax.f32 %v417, 0.0
        %v450 = vmax.f32 %v420, 0.0
        %v451 = vmax.f32 %v425, 0.0
        %v452 = vmax.f32 %v428, 0.0
        %v453 = vmax.f32 %v433, 0.0
        %v454 = vmax.f32 %v436, 0.0
        %v455 = vpack.c.bf16 %v440, %v439
        %v456 = vpack.c.bf16 %v442, %v441
        %v457 = vpack.c.bf16 %v444, %v443
        %v458 = vpack.c.bf16 %v446, %v445
        %v459 = vpack.c.bf16 %v448, %v447
        %v460 = vpack.c.bf16 %v450, %v449
        %v461 = vpack.c.bf16 %v452, %v451
        %v462 = vpack.c.bf16 %v454, %v453
        %v471 = vunpack.c.l.b16 %v455
        %v472 = vunpack.c.h.b16 %v455
        %v473 = vunpack.c.l.b16 %v456
        %v474 = vunpack.c.h.b16 %v456
        %v475 = vunpack.c.l.b16 %v457
        %v476 = vunpack.c.h.b16 %v457
        %v477 = vunpack.c.l.b16 %v458
        %v478 = vunpack.c.h.b16 %v458
        %v479 = vunpack.c.l.b16 %v459
        %v480 = vunpack.c.h.b16 %v459
        %v481 = vunpack.c.l.b16 %v460
        %v482 = vunpack.c.h.b16 %v460
        %v483 = vunpack.c.l.b16 %v461
        %v484 = vunpack.c.h.b16 %v461
        %v485 = vunpack.c.l.b16 %v462
        %v486 = vunpack.c.h.b16 %v462
        %v487 = vpack.c.b16 %v471, %v471
        %v488 = vpack.c.b16 %v472, %v472
        %v489 = vpack.c.b16 %v473, %v473
        %v490 = vpack.c.b16 %v474, %v474
        %v491 = vpack.c.b16 %v475, %v475
        %v492 = vpack.c.b16 %v476, %v476
        %v493 = vpack.c.b16 %v477, %v477
        %v494 = vpack.c.b16 %v478, %v478
        %v495 = vpack.c.b16 %v479, %v479
        %v496 = vpack.c.b16 %v480, %v480
        %v497 = vpack.c.b16 %v481, %v481
        %v498 = vpack.c.b16 %v482, %v482
        %v499 = vpack.c.b16 %v483, %v483
        %v500 = vpack.c.b16 %v484, %v484
        %v501 = vpack.c.b16 %v485, %v485
        %v502 = vpack.c.b16 %v486, %v486
        %519 = vst [vmem:[%s203] sm:$0xf] %v487
        %520 = vst [vmem:[%s203 + $0x4] sm:$0xf] %v488
        %521 = vst [vmem:[%s203 + $0x8] sm:$0xf] %v489
        %522 = vst [vmem:[%s203 + $0xc] sm:$0xf] %v490
        %523 = vst [vmem:[%s203 + $0x10] sm:$0xf] %v491
        %524 = vst [vmem:[%s203 + $0x14] sm:$0xf] %v492
        %525 = vst [vmem:[%s203 + $0x18] sm:$0xf] %v493
        %526 = vst [vmem:[%s203 + $0x1c] sm:$0xf] %v494
        %527 = vst [vmem:[%s203 + $0x20] sm:$0xf] %v495
        %528 = vst [vmem:[%s203 + $0x24] sm:$0xf] %v496
        %529 = vst [vmem:[%s203 + $0x28] sm:$0xf] %v497
        %530 = vst [vmem:[%s203 + $0x2c] sm:$0xf] %v498
        %531 = vst [vmem:[%s203 + $0x30] sm:$0xf] %v499
        %532 = vst [vmem:[%s203 + $0x34] sm:$0xf] %v500
        %533 = vst [vmem:[%s203 + $0x38] sm:$0xf] %v501
        %534 = vst [vmem:[%s203 + $0x3c] sm:$0xf] %v502
        %s535 = sand.u32 %s97, 1
        %s536 = scalar_lea.sflag [#allocation4], %s535
        %s537 = sand.u32 %s97, 1
        %s538 = smul.addr %s537, 64
        %s539 = scalar_lea.vmem [#allocation7], %s538
        // Predicated region
        $region41: #{tpu_custom_call.1} parent=31 // pred_check
          %p540 = pneg %p107
        $region42: #{tpu_custom_call.1} parent=31 // pred_check_branch
          %542 = sbr.rel (%p540) target = $region44
        $region43: #{tpu_custom_call.1} parent=31 // pred_region
          %s543 = smul.u32 16, %s21
          %s545 = ssub.s32 1024, 1024
          %546 = vsyncadd %s536, %s545
          %s547 = smul.addr %s543, 64
          %s548 = scalar_lea.hbm %s3, %s547
          %s549 = sshll.u32 %s539, 4
          %s550 = int_to_ptr.vmem [resolvable:$true] %s549
          %555 = dma.vmem_to_hbm [thread:$0]  %s550, 1024, %s548, %s536, 64, 64, 4
        $region44: #{tpu_custom_call.1} parent=31 // pred_fallthru
          _
      $region32: #{tpu_custom_call.1} parent=5 // pred_fallthru
        _
      %p556 = scmp.le.s32.totalorder 2, %s16
      // Predicated region
      $region45: #{tpu_custom_call.1} parent=5 // pred_check
        %p557 = pneg %p556
      $region46: #{tpu_custom_call.1} parent=5 // pred_check_branch
        %559 = sbr.rel (%p557) target = $region48
      $region47: #{tpu_custom_call.1} parent=5 // pred_region
        %s560 = ssub.s32 %s16, 2
        // Predicated region
        $region49: #{tpu_custom_call.1} parent=47 // pred_check
          %p561 = pneg %p113
        $region50: #{tpu_custom_call.1} parent=47 // pred_check_branch
          %563 = sbr.rel (%p561) target = $region52
        $region51: #{tpu_custom_call.1} parent=47 // pred_region
          %s564 = sand.u32 %s98, 1
          %s565 = scalar_lea.sflag [#allocation4], %s564
          %s566 = sand.u32 %s98, 1
          %s567 = smul.addr %s566, 64
          %s568 = scalar_lea.vmem [#allocation7], %s567
          %569 = dma.done %s565, 1024
        $region52: #{tpu_custom_call.1} parent=47 // pred_fallthru
          _
      $region48: #{tpu_custom_call.1} parent=5 // pred_fallthru
        _
    $region6: #{tpu_custom_call.1} parent=1 // loop_footer
      %s20 = sadd.s32 1, %s16
    $region7: #{tpu_custom_call.1} parent=1 // loop_footer_branch
      %15 = sbr.rel target = $region3
    $region8: #{tpu_custom_call.1} parent=1 // loop_exit
      _
    %570 = vsyncpa [#allocation3], 1
    %s571 = scalar_lea.sflag [#allocation3], 1
    %572 = vsyncpa %s571, 1
    %573 = vsyncpa [#allocation6], 1
    %574 = vsyncpa [#allocation4], 1
    %s575 = scalar_lea.sflag [#allocation4], 1
    %576 = vsyncpa %s575, 1

</llo_original>
